<compile_context>
chip_gen: v6e
topology: v6e:2x2x1
jax: 0.10.0
libtpu: 0.0.40
codegen_flags: <defaults>
</compile_context>

<pallas_src>
import functools

import jax
import jax.numpy as jnp
import numpy as np
from jax import lax
from jax.experimental import pallas as pl
from jax.experimental.pallas import tpu as pltpu


def _round_up(x, m):
    return ((x + m - 1) // m) * m


def _cdiv(a, b):
    return -(-a // b)


def _affinity_kernel(s_ref, t_ref, o_ref, ss_acc, tt_acc, st_acc, *,
                     n_rows, tn, td, hw, num_d, rem_cols):
    """One (TN, TD) tile of the flattened (B*C, HW) student/teacher arrays."""
    # program_id only at the top level (interpret/Mosaic-safe); values are
    # then used inside pl.when bodies.
    row_blk = pl.program_id(0)
    d_idx = pl.program_id(1)

    @pl.when(d_idx == 0)
    def _init():
        ss_acc[...] = jnp.zeros_like(ss_acc)
        tt_acc[...] = jnp.zeros_like(tt_acc)
        st_acc[...] = jnp.zeros_like(st_acc)

    def accumulate(valid_cols):
        # Static unroll over 128-lane chunks: steady state is pure vld + VALU
        # multiply-accumulate into the lane-shaped (TN, 128) scratch.
        n_chunks = (valid_cols + 127) // 128
        for g in range(n_chunks):
            lo = g * 128
            s_g = s_ref[:, lo:lo + 128].astype(jnp.float32)
            t_g = t_ref[:, lo:lo + 128].astype(jnp.float32)
            if lo + 128 > valid_cols:
                # Ragged last chunk: lanes past the real feature dim hold
                # garbage from the clipped DMA — zero them before squaring.
                lane = lax.broadcasted_iota(jnp.int32, s_g.shape, 1)
                keep = (lo + lane) < valid_cols
                s_g = jnp.where(keep, s_g, 0.0)
                t_g = jnp.where(keep, t_g, 0.0)
            ss_acc[...] += s_g * s_g
            tt_acc[...] += t_g * t_g
            st_acc[...] += s_g * t_g

    if num_d == 1 or rem_cols == td:
        # Every feature tile has the same static valid width -> no branch.
        accumulate(rem_cols if num_d == 1 else td)
    else:
        @pl.when(d_idx < num_d - 1)
        def _full_tile():
            accumulate(td)

        @pl.when(d_idx == num_d - 1)
        def _ragged_tile():
            accumulate(rem_cols)

    @pl.when(d_idx == num_d - 1)
    def _epilogue():
        ss = jnp.sum(ss_acc[...], axis=1, keepdims=True)      # (TN, 1)
        tt = jnp.sum(tt_acc[...], axis=1, keepdims=True)
        st = jnp.sum(st_acc[...], axis=1, keepdims=True)
        # cos = <s, t> / (||s|| ||t||) via rsqrt * mul (no per-element divide).
        cos = st * lax.rsqrt(ss * tt)
        # || s_n s_n^T - t_n t_n^T ||_F / HW  ==  sqrt(2 * (1 - cos^2)) / HW.
        r = jnp.sqrt(2.0 * jnp.maximum(1.0 - cos * cos, 0.0)) * (1.0 / hw)
        # Mask rows past B*C (last row block may be ragged).
        row_ids = row_blk * tn + lax.broadcasted_iota(jnp.int32, (tn, 1), 0)
        r = jnp.where(row_ids < n_rows, r, 0.0)
        # Per-row-tile partial sum, replicated into a lane-dense (1, 8, 128)
        # block so the store is a full unmasked vst.
        o_ref[...] = jnp.broadcast_to(jnp.sum(r), (1, 8, 128))


def affinity_loss(student_out, teacher_out, reduction="mean", *,
                  max_feature_tile=None):
    """AffinityLoss forward for NCHW (or NC...) student/teacher feature maps."""
    assert student_out.shape == teacher_out.shape, "student/teacher shapes must match"
    b, c = int(student_out.shape[0]), int(student_out.shape[1])
    hw = 1
    for dim in student_out.shape[2:]:
        hw *= int(dim)
    n, d = b * c, hw

    s = student_out.reshape(n, d)
    t = teacher_out.reshape(n, d)

    # Row tile: multiple of 8, capped at 256; shrink so the "parallel" row axis
    # has >= 2 blocks whenever possible (v7x has 2 TensorCores per chip).
    tn = min(256, max(8, _round_up(_cdiv(n, 2), 8)))
    grid_rows = _cdiv(n, tn)

    # Feature tile: multiple of 128 with a dtype-aware cap. 2 inputs x 2
    # pipeline buffers x (256 x 4096 x 4 B) = 16 MiB of input buffers — fits
    # every generation's VMEM (incl. v7x's 64 MiB/TC) with headroom.
    itemsize = jnp.dtype(student_out.dtype).itemsize
    td_cap = 8192 if itemsize <= 2 else 4096
    if max_feature_tile is not None:
        td_cap = max(128, (int(max_feature_tile) // 128) * 128)
    td = min(td_cap, _round_up(d, 128))
    grid_d = _cdiv(d, td)
    rem_cols = d - (grid_d - 1) * td        # valid columns in the last D tile

    kernel = functools.partial(
        _affinity_kernel, n_rows=n, tn=tn, td=td, hw=float(hw),
        num_d=grid_d, rem_cols=rem_cols)

    cost = pl.CostEstimate(
        flops=6 * n * d,                    # 3 muls + 3 adds per element
        transcendentals=2 * n,              # rsqrt + sqrt per (b, c) row
        bytes_accessed=2 * n * d * itemsize + grid_rows * 8 * 128 * 4,
    )

    partials = pl.pallas_call(
        kernel,
        out_shape=jax.ShapeDtypeStruct((grid_rows, 8, 128), jnp.float32),
        grid_spec=pltpu.PrefetchScalarGridSpec(
            num_scalar_prefetch=0,
            grid=(grid_rows, grid_d),
            in_specs=[
                pl.BlockSpec((tn, td), lambda i, j: (i, j)),
                pl.BlockSpec((tn, td), lambda i, j: (i, j)),
            ],
            out_specs=pl.BlockSpec((1, 8, 128), lambda i, j: (i, 0, 0)),
            scratch_shapes=[pltpu.VMEM((tn, 128), jnp.float32)] * 3,
        ),
        compiler_params=pltpu.CompilerParams(
            dimension_semantics=("parallel", "arbitrary"),
            vmem_limit_bytes=48 * 1024 * 1024,
        ),
        cost_estimate=cost,
    )(s, t)

    total = jnp.sum(partials[:, 0, 0])
    return total / b if reduction == "mean" else total


def _affinity_ref(student_out, teacher_out, reduction="mean"):
    """Direct JAX port of the PyTorch forward (materializes HW x HW matrices)."""
    b, c = student_out.shape[0], student_out.shape[1]
    s = student_out.reshape(b, c, -1).astype(jnp.float32)
    t = teacher_out.reshape(b, c, -1).astype(jnp.float32)
    hw = s.shape[2]
    s = s / jnp.linalg.norm(s, axis=2, keepdims=True)
    t = t / jnp.linalg.norm(t, axis=2, keepdims=True)
    total = jnp.zeros((b,), jnp.float32)
    for i in range(c):
        a_s = jnp.einsum("bi,bj->bij", s[:, i], s[:, i])
        a_t = jnp.einsum("bi,bj->bij", t[:, i], t[:, i])
        diff = (a_s - a_t) / hw
        total = total + jnp.sqrt(jnp.sum(diff * diff, axis=(1, 2)))
    return jnp.mean(total) if reduction == "mean" else jnp.sum(total)


if __name__ == "__main__":
    key = jax.random.PRNGKey(0)
    k1, k2, k3, k4, k5, k6 = jax.random.split(key, 6)

    # Small synthetic NCHW student/teacher feature maps (as in the hooked io dicts).
    student = jax.random.normal(k1, (2, 4, 16, 16), dtype=jnp.float32)
    teacher = jax.random.normal(k2, (2, 4, 16, 16), dtype=jnp.float32)
    for red in ("mean", "sum"):
        out = jax.block_until_ready(affinity_loss(student, teacher, reduction=red))
        ref = _affinity_ref(student, teacher, reduction=red)
        np.testing.assert_allclose(np.asarray(out), np.asarray(ref),
                                   rtol=1e-4, atol=1e-6)

    # Ragged rows (B*C = 15 -> two 8-row blocks) and ragged lanes (HW = 63 < 128).
    student2 = jax.random.normal(k3, (3, 5, 9, 7), dtype=jnp.float32)
    teacher2 = jax.random.normal(k4, (3, 5, 9, 7), dtype=jnp.float32)
    out2 = jax.block_until_ready(affinity_loss(student2, teacher2, reduction="mean"))
    ref2 = _affinity_ref(student2, teacher2, reduction="mean")
    np.testing.assert_allclose(np.asarray(out2), np.asarray(ref2),
                               rtol=1e-4, atol=1e-6)

    # bf16 inputs + forced small feature tile: exercises the multi-feature-tile
    # accumulation path and the ragged last feature tile (HW = 342, td = 128).
    student3 = jax.random.normal(k5, (2, 3, 18, 19), dtype=jnp.bfloat16)
    teacher3 = jax.random.normal(k6, (2, 3, 18, 19), dtype=jnp.bfloat16)
    out3 = jax.block_until_ready(
        affinity_loss(student3, teacher3, reduction="mean", max_feature_tile=128))
    ref3 = _affinity_ref(student3, teacher3, reduction="mean")
    np.testing.assert_allclose(np.asarray(out3), np.asarray(ref3),
                               rtol=1e-3, atol=1e-5)

    print("KERNEL_OK")
</pallas_src>

<mosaic_0001>
module attributes {stable_mosaic.version = 11 : i64} {
  func.func @_affinity_kernel(%arg0: i32, %arg1: i32, %arg2: memref<8x256xf32, #tpu.memory_space<vmem>>, %arg3: memref<8x256xf32, #tpu.memory_space<vmem>>, %arg4: memref<1x8x128xf32, #tpu.memory_space<vmem>>, %arg5: memref<8x128xf32, #tpu.memory_space<vmem>>, %arg6: memref<8x128xf32, #tpu.memory_space<vmem>>, %arg7: memref<8x128xf32, #tpu.memory_space<vmem>>) attributes {dimension_semantics = [#tpu.dimension_semantics<parallel>, #tpu.dimension_semantics<arbitrary>], iteration_bounds = array<i64: 1, 1>, scalar_prefetch = 0 : i64, scratch_operands = 3 : i64, tpu.core_type = #tpu.core_type<tc>, window_params = [{transform_indices = @transform_0, window_bounds = array<i64: 8, 256>}, {transform_indices = @transform_1, window_bounds = array<i64: 8, 256>}, {transform_indices = @transform_2, window_bounds = array<i64: 1, 8, 128>}]} {
    %c0_i32 = arith.constant 0 : i32
    %0 = arith.cmpi eq, %arg1, %c0_i32 : i32
    %1 = arith.extui %0 : i1 to i32
    %c0_i32_0 = arith.constant 0 : i32
    %2 = arith.cmpi ne, %1, %c0_i32_0 : i32
    scf.if %2 {
      %cst = arith.constant 0.000000e+00 : f32
      %34 = vector.broadcast %cst : f32 to vector<8x128xf32>
      %c0_33 = arith.constant 0 : index
      %c0_34 = arith.constant 0 : index
      %35 = vector.load %arg5[%c0_33, %c0_34] : memref<8x128xf32, #tpu.memory_space<vmem>>, vector<8x128xf32>
      tpu.vector_store %arg5[%c0_33, %c0_34], %34 {strides = array<i32>} : memref<8x128xf32, #tpu.memory_space<vmem>>, vector<8x128xf32>,
      %cst_35 = arith.constant 0.000000e+00 : f32
      %36 = vector.broadcast %cst_35 : f32 to vector<8x128xf32>
      %c0_36 = arith.constant 0 : index
      %c0_37 = arith.constant 0 : index
      %37 = vector.load %arg6[%c0_36, %c0_37] : memref<8x128xf32, #tpu.memory_space<vmem>>, vector<8x128xf32>
      tpu.vector_store %arg6[%c0_36, %c0_37], %36 {strides = array<i32>} : memref<8x128xf32, #tpu.memory_space<vmem>>, vector<8x128xf32>,
      %cst_38 = arith.constant 0.000000e+00 : f32
      %38 = vector.broadcast %cst_38 : f32 to vector<8x128xf32>
      %c0_39 = arith.constant 0 : index
      %c0_40 = arith.constant 0 : index
      %39 = vector.load %arg7[%c0_39, %c0_40] : memref<8x128xf32, #tpu.memory_space<vmem>>, vector<8x128xf32>
      tpu.vector_store %arg7[%c0_39, %c0_40], %38 {strides = array<i32>} : memref<8x128xf32, #tpu.memory_space<vmem>>, vector<8x128xf32>,
    } else {
    }
    %c0 = arith.constant 0 : index
    %c0_1 = arith.constant 0 : index
    %3 = vector.load %arg2[%c0, %c0_1] : memref<8x256xf32, #tpu.memory_space<vmem>>, vector<8x128xf32>
    %c0_2 = arith.constant 0 : index
    %c0_3 = arith.constant 0 : index
    %4 = vector.load %arg3[%c0_2, %c0_3] : memref<8x256xf32, #tpu.memory_space<vmem>>, vector<8x128xf32>
    %c0_4 = arith.constant 0 : index
    %c0_5 = arith.constant 0 : index
    %5 = vector.load %arg5[%c0_4, %c0_5] : memref<8x128xf32, #tpu.memory_space<vmem>>, vector<8x128xf32>
    %6 = arith.mulf %3, %3 : vector<8x128xf32>
    %7 = arith.addf %5, %6 : vector<8x128xf32>
    %c0_6 = arith.constant 0 : index
    %c0_7 = arith.constant 0 : index
    %8 = vector.load %arg5[%c0_6, %c0_7] : memref<8x128xf32, #tpu.memory_space<vmem>>, vector<8x128xf32>
    tpu.vector_store %arg5[%c0_6, %c0_7], %7 {strides = array<i32>} : memref<8x128xf32, #tpu.memory_space<vmem>>, vector<8x128xf32>,
    %c0_8 = arith.constant 0 : index
    %c0_9 = arith.constant 0 : index
    %9 = vector.load %arg6[%c0_8, %c0_9] : memref<8x128xf32, #tpu.memory_space<vmem>>, vector<8x128xf32>
    %10 = arith.mulf %4, %4 : vector<8x128xf32>
    %11 = arith.addf %9, %10 : vector<8x128xf32>
    %c0_10 = arith.constant 0 : index
    %c0_11 = arith.constant 0 : index
    %12 = vector.load %arg6[%c0_10, %c0_11] : memref<8x128xf32, #tpu.memory_space<vmem>>, vector<8x128xf32>
    tpu.vector_store %arg6[%c0_10, %c0_11], %11 {strides = array<i32>} : memref<8x128xf32, #tpu.memory_space<vmem>>, vector<8x128xf32>,
    %c0_12 = arith.constant 0 : index
    %c0_13 = arith.constant 0 : index
    %13 = vector.load %arg7[%c0_12, %c0_13] : memref<8x128xf32, #tpu.memory_space<vmem>>, vector<8x128xf32>
    %14 = arith.mulf %3, %4 : vector<8x128xf32>
    %15 = arith.addf %13, %14 : vector<8x128xf32>
    %c0_14 = arith.constant 0 : index
    %c0_15 = arith.constant 0 : index
    %16 = vector.load %arg7[%c0_14, %c0_15] : memref<8x128xf32, #tpu.memory_space<vmem>>, vector<8x128xf32>
    tpu.vector_store %arg7[%c0_14, %c0_15], %15 {strides = array<i32>} : memref<8x128xf32, #tpu.memory_space<vmem>>, vector<8x128xf32>,
    %c0_16 = arith.constant 0 : index
    %c128 = arith.constant 128 : index
    %17 = vector.load %arg2[%c0_16, %c128] : memref<8x256xf32, #tpu.memory_space<vmem>>, vector<8x128xf32>
    %c0_17 = arith.constant 0 : index
    %c128_18 = arith.constant 128 : index
    %18 = vector.load %arg3[%c0_17, %c128_18] : memref<8x256xf32, #tpu.memory_space<vmem>>, vector<8x128xf32>
    %c0_19 = arith.constant 0 : index
    %c0_20 = arith.constant 0 : index
    %19 = vector.load %arg5[%c0_19, %c0_20] : memref<8x128xf32, #tpu.memory_space<vmem>>, vector<8x128xf32>
    %20 = arith.mulf %17, %17 : vector<8x128xf32>
    %21 = arith.addf %19, %20 : vector<8x128xf32>
    %c0_21 = arith.constant 0 : index
    %c0_22 = arith.constant 0 : index
    %22 = vector.load %arg5[%c0_21, %c0_22] : memref<8x128xf32, #tpu.memory_space<vmem>>, vector<8x128xf32>
    tpu.vector_store %arg5[%c0_21, %c0_22], %21 {strides = array<i32>} : memref<8x128xf32, #tpu.memory_space<vmem>>, vector<8x128xf32>,
    %c0_23 = arith.constant 0 : index
    %c0_24 = arith.constant 0 : index
    %23 = vector.load %arg6[%c0_23, %c0_24] : memref<8x128xf32, #tpu.memory_space<vmem>>, vector<8x128xf32>
    %24 = arith.mulf %18, %18 : vector<8x128xf32>
    %25 = arith.addf %23, %24 : vector<8x128xf32>
    %c0_25 = arith.constant 0 : index
    %c0_26 = arith.constant 0 : index
    %26 = vector.load %arg6[%c0_25, %c0_26] : memref<8x128xf32, #tpu.memory_space<vmem>>, vector<8x128xf32>
    tpu.vector_store %arg6[%c0_25, %c0_26], %25 {strides = array<i32>} : memref<8x128xf32, #tpu.memory_space<vmem>>, vector<8x128xf32>,
    %c0_27 = arith.constant 0 : index
    %c0_28 = arith.constant 0 : index
    %27 = vector.load %arg7[%c0_27, %c0_28] : memref<8x128xf32, #tpu.memory_space<vmem>>, vector<8x128xf32>
    %28 = arith.mulf %17, %18 : vector<8x128xf32>
    %29 = arith.addf %27, %28 : vector<8x128xf32>
    %c0_29 = arith.constant 0 : index
    %c0_30 = arith.constant 0 : index
    %30 = vector.load %arg7[%c0_29, %c0_30] : memref<8x128xf32, #tpu.memory_space<vmem>>, vector<8x128xf32>
    tpu.vector_store %arg7[%c0_29, %c0_30], %29 {strides = array<i32>} : memref<8x128xf32, #tpu.memory_space<vmem>>, vector<8x128xf32>,
    %c0_i32_31 = arith.constant 0 : i32
    %31 = arith.cmpi eq, %arg1, %c0_i32_31 : i32
    %32 = arith.extui %31 : i1 to i32
    %c0_i32_32 = arith.constant 0 : i32
    %33 = arith.cmpi ne, %32, %c0_i32_32 : i32
    scf.if %33 {
      %c0_33 = arith.constant 0 : index
      %c0_34 = arith.constant 0 : index
      %34 = vector.load %arg5[%c0_33, %c0_34] : memref<8x128xf32, #tpu.memory_space<vmem>>, vector<8x128xf32>
      %cst = arith.constant dense<0.000000e+00> : vector<8xf32>
      %35 = vector.multi_reduction <add>, %34, %cst [1] : vector<8x128xf32> to vector<8xf32>
      %36 = vector.shape_cast %35 : vector<8xf32> to vector<8x1xf32>
      %c0_35 = arith.constant 0 : index
      %c0_36 = arith.constant 0 : index
      %37 = vector.load %arg6[%c0_35, %c0_36] : memref<8x128xf32, #tpu.memory_space<vmem>>, vector<8x128xf32>
      %cst_37 = arith.constant dense<0.000000e+00> : vector<8xf32>
      %38 = vector.multi_reduction <add>, %37, %cst_37 [1] : vector<8x128xf32> to vector<8xf32>
      %39 = vector.shape_cast %38 : vector<8xf32> to vector<8x1xf32>
      %c0_38 = arith.constant 0 : index
      %c0_39 = arith.constant 0 : index
      %40 = vector.load %arg7[%c0_38, %c0_39] : memref<8x128xf32, #tpu.memory_space<vmem>>, vector<8x128xf32>
      %cst_40 = arith.constant dense<0.000000e+00> : vector<8xf32>
      %41 = vector.multi_reduction <add>, %40, %cst_40 [1] : vector<8x128xf32> to vector<8xf32>
      %42 = vector.shape_cast %41 : vector<8xf32> to vector<8x1xf32>
      %43 = arith.mulf %36, %39 : vector<8x1xf32>
      %44 = math.rsqrt %43 : vector<8x1xf32>
      %45 = arith.mulf %42, %44 : vector<8x1xf32>
      %46 = arith.mulf %45, %45 : vector<8x1xf32>
      %cst_41 = arith.constant 1.000000e+00 : f32
      %47 = vector.broadcast %cst_41 : f32 to vector<8x1xf32>
      %48 = arith.subf %47, %46 : vector<8x1xf32>
      %cst_42 = arith.constant 0.000000e+00 : f32
      %49 = vector.broadcast %cst_42 : f32 to vector<8x1xf32>
      %50 = arith.maximumf %48, %49 : vector<8x1xf32>
      %cst_43 = arith.constant 2.000000e+00 : f32
      %51 = vector.broadcast %cst_43 : f32 to vector<8x1xf32>
      %52 = arith.mulf %51, %50 : vector<8x1xf32>
      %53 = math.sqrt %52 : vector<8x1xf32>
      %cst_44 = arith.constant 3.906250e-03 : f32
      %54 = vector.broadcast %cst_44 : f32 to vector<8x1xf32>
      %55 = arith.mulf %53, %54 : vector<8x1xf32>
      %c8_i32 = arith.constant 8 : i32
      %56 = arith.muli %arg0, %c8_i32 : i32
      %57 = tpu.iota {dimensions = array<i32: 0>} : vector<8x1xi32>
      %58 = vector.broadcast %56 : i32 to vector<8x1xi32>
      %59 = arith.addi %58, %57 : vector<8x1xi32>
      %c8_i32_45 = arith.constant 8 : i32
      %60 = vector.broadcast %c8_i32_45 : i32 to vector<8x1xi32>
      %61 = arith.cmpi slt, %59, %60 : vector<8x1xi32>
      %cst_46 = arith.constant 0.000000e+00 : f32
      %62 = vector.broadcast %cst_46 : f32 to vector<8x1xf32>
      %63 = arith.select %61, %55, %62 : vector<8x1xi1>, vector<8x1xf32>
      %64 = vector.shape_cast %63 : vector<8x1xf32> to vector<1x8x1xf32>
      %cst_47 = arith.constant dense<0.000000e+00> : vector<1xf32>
      %65 = vector.multi_reduction <add>, %64, %cst_47 [1, 2] : vector<1x8x1xf32> to vector<1xf32>
      %66 = vector.shape_cast %65 : vector<1xf32> to vector<1x1x1xf32>
      %67 = vector.extract %66[0, 0, 0] : f32 from vector<1x1x1xf32>
      %68 = vector.broadcast %67 : f32 to vector<1x8x128xf32>
      %c0_48 = arith.constant 0 : index
      %c0_49 = arith.constant 0 : index
      %c0_50 = arith.constant 0 : index
      %69 = vector.load %arg4[%c0_48, %c0_49, %c0_50] : memref<1x8x128xf32, #tpu.memory_space<vmem>>, vector<1x8x128xf32>
      tpu.vector_store %arg4[%c0_48, %c0_49, %c0_50], %68 {strides = array<i32>} : memref<1x8x128xf32, #tpu.memory_space<vmem>>, vector<1x8x128xf32>,
    } else {
    }
    return
  }
  func.func @transform_0(%arg0: i32, %arg1: i32) -> (i32, i32) {
    %c0_i32 = arith.constant 0 : i32
    return %arg0, %arg1 : i32, i32
  }
  func.func @transform_1(%arg0: i32, %arg1: i32) -> (i32, i32) {
    %c0_i32 = arith.constant 0 : i32
    return %arg0, %arg1 : i32, i32
  }
  func.func @transform_2(%arg0: i32, %arg1: i32) -> (i32, i32, i32) {
    %c0_i32 = arith.constant 0 : i32
    %c0_i32_0 = arith.constant 0 : i32
    %c0_i32_1 = arith.constant 0 : i32
    return %arg0, %c0_i32, %c0_i32_0 : i32, i32, i32
  }
}

</mosaic_0001>

<llo_original>
// kernel: tpu_custom_call.1
$region0: #{tpu_custom_call.1}
  #allocation0 [shape = 'u32[]', space=smem, size = 0x4, offset = 0x4, fixed_abs, tag = 'smem constant byte address 0x4 - core index']
  #allocation1 [shape = 'u32[144,128]{1,0:T(1,128)}', space=vmem, size = 0x12000, scoped, tag = 'internal scratch']
  #allocation2 [shape = 'f32[8,128]{1,0:T(8,128)}', space=vmem, size = 0x1000, scoped, tag = 'scratch operand']
  #allocation3 [shape = 'f32[8,128]{1,0:T(8,128)}', space=vmem, size = 0x1000, scoped, tag = 'scratch operand']
  #allocation4 [shape = 'f32[8,128]{1,0:T(8,128)}', space=vmem, size = 0x1000, scoped, tag = 'scratch operand']
  %s0 = inlined_call_operand.hbm [shape: f32[8,256], index: 0, kind: input, shape index: {}]
  %s1 = inlined_call_operand.hbm [shape: f32[8,256], index: 1, kind: input, shape index: {}]
  %s2 = inlined_call_operand.hbm [shape: f32[1,8,128], index: 2, kind: output, shape index: {}]
  %s3 = sld [smem:[#allocation0]]
  $region34: #{tpu_custom_call.1} parent=0
    _
  %s5 = ssub.s32 1, %s3
  %s6 = scalar_select 0, %s5, %s3
  $region1: #{tpu_custom_call.1} parent=0
    #allocation5 [shape = 'u8[8192]{0}', space=vmem, size = 0x2000, scoped, tag = 'input window, operand 0, single buffered']
    #allocation6 [shape = 's32[1]{0}', space=sflag, size = 0x4, scoped, tag = 'scoped memory for tpu_custom_call.1']
    #allocation7 [shape = 's32[1]{0}', space=sflag, size = 0x4, scoped, tag = 'scoped memory for tpu_custom_call.1']
    #allocation8 [shape = 'u8[8192]{0}', space=vmem, size = 0x2000, scoped, tag = 'input window, operand 1, single buffered']
    #allocation9 [shape = 's32[1]{0}', space=sflag, size = 0x4, scoped, tag = 'scoped memory for tpu_custom_call.1']
    #allocation10 [shape = 'u8[4096]{0}', space=vmem, size = 0x1000, scoped, tag = 'output window, operand 0, single buffered']
    %7 = vsyncpa [#allocation6], 0
    %8 = vsyncpa [#allocation9], 0
    %9 = vsyncpa [#allocation7], 0
    // Predicated region
    $region2: #{tpu_custom_call.1} parent=1 // pred_check
      _
    $region3: #{tpu_custom_call.1} parent=1 // pred_check_branch
      %11 = sbr.rel (0) target = $region5
    $region4: #{tpu_custom_call.1} parent=1 // pred_region
      %s13 = ssub.s32 256, 256
      %14 = vsyncadd [#allocation6], %s13
      %s16 = sshll.u32 [#allocation5], 4
      %s17 = int_to_ptr.vmem [resolvable:$true] %s16
      %19 = dma.hbm_to_vmem [thread:$0]  %s0, 256, %s17, [#allocation6]
    $region5: #{tpu_custom_call.1} parent=1 // pred_fallthru
      _
    // Predicated region
    $region6: #{tpu_custom_call.1} parent=1 // pred_check
      _
    $region7: #{tpu_custom_call.1} parent=1 // pred_check_branch
      %21 = sbr.rel (0) target = $region9
    $region8: #{tpu_custom_call.1} parent=1 // pred_region
      %s23 = ssub.s32 256, 256
      %24 = vsyncadd [#allocation9], %s23
      %s26 = sshll.u32 [#allocation8], 4
      %s27 = int_to_ptr.vmem [resolvable:$true] %s26
      %29 = dma.hbm_to_vmem [thread:$0]  %s1, 256, %s27, [#allocation9]
    $region9: #{tpu_custom_call.1} parent=1 // pred_fallthru
      _
    // Predicated region
    $region10: #{tpu_custom_call.1} parent=1 // pred_check
      _
    $region11: #{tpu_custom_call.1} parent=1 // pred_check_branch
      %31 = sbr.rel (0) target = $region13
    $region12: #{tpu_custom_call.1} parent=1 // pred_region
      %32 = dma.done [#allocation6], 256
    $region13: #{tpu_custom_call.1} parent=1 // pred_fallthru
      _
    // Predicated region
    $region14: #{tpu_custom_call.1} parent=1 // pred_check
      _
    $region15: #{tpu_custom_call.1} parent=1 // pred_check_branch
      %34 = sbr.rel (0) target = $region17
    $region16: #{tpu_custom_call.1} parent=1 // pred_region
      %35 = dma.done [#allocation9], 256
    $region17: #{tpu_custom_call.1} parent=1 // pred_fallthru
      _
    %p36 = scmp.eq.s32.totalorder 0, 0
    // Predicated region
    $region18: #{tpu_custom_call.1} parent=1 // pred_check
      %p37 = pneg %p36
    $region19: #{tpu_custom_call.1} parent=1 // pred_check_branch
      %39 = sbr.rel (%p37) target = $region21
    $region20: #{tpu_custom_call.1} parent=1 // pred_region
      %40 = vst [vmem:[#allocation2] sm:$0xff] 0.0
      %41 = vst [vmem:[#allocation3] sm:$0xff] 0.0
      %42 = vst [vmem:[#allocation4] sm:$0xff] 0.0
    $region21: #{tpu_custom_call.1} parent=1 // pred_fallthru
      _
    %v43 = vld [vmem:[#allocation5] sm:$0xff]
    %v44 = vld [vmem:[#allocation8] sm:$0xff]
    %v45 = vld [vmem:[#allocation2] sm:$0xff]
    %v46 = vmul.f32 %v43, %v43
    %v47 = vadd.f32 %v45, %v46
    %48 = vst [vmem:[#allocation2] sm:$0xff] %v47
    %v49 = vld [vmem:[#allocation3] sm:$0xff]
    %v50 = vmul.f32 %v44, %v44
    %v51 = vadd.f32 %v49, %v50
    %52 = vst [vmem:[#allocation3] sm:$0xff] %v51
    %v53 = vld [vmem:[#allocation4] sm:$0xff]
    %v54 = vmul.f32 %v43, %v44
    %v55 = vadd.f32 %v53, %v54
    %56 = vst [vmem:[#allocation4] sm:$0xff] %v55
    %v57 = vld [vmem:[#allocation5 + $0x8] sm:$0xff]
    %v58 = vld [vmem:[#allocation8 + $0x8] sm:$0xff]
    %v59 = vld [vmem:[#allocation2] sm:$0xff]
    %v60 = vmul.f32 %v57, %v57
    %v61 = vadd.f32 %v59, %v60
    %62 = vst [vmem:[#allocation2] sm:$0xff] %v61
    %v63 = vld [vmem:[#allocation3] sm:$0xff]
    %v64 = vmul.f32 %v58, %v58
    %v65 = vadd.f32 %v63, %v64
    %66 = vst [vmem:[#allocation3] sm:$0xff] %v65
    %v67 = vld [vmem:[#allocation4] sm:$0xff]
    %v68 = vmul.f32 %v57, %v58
    %v69 = vadd.f32 %v67, %v68
    %70 = vst [vmem:[#allocation4] sm:$0xff] %v69
    // Predicated region
    $region22: #{tpu_custom_call.1} parent=1 // pred_check
      %p71 = pneg %p36
    $region23: #{tpu_custom_call.1} parent=1 // pred_check_branch
      %73 = sbr.rel (%p71) target = $region25
    $region24: #{tpu_custom_call.1} parent=1 // pred_region
      %v74 = vld [vmem:[#allocation2] sm:$0xff]
      %75 = vadd.xlane.f32.xlu0 %v74
      %v76 = vpop.xlane.xlu0 %75
      %v77 = vld [vmem:[#allocation3] sm:$0xff]
      %78 = vadd.xlane.f32.xlu0 %v77
      %v79 = vpop.xlane.xlu0 %78
      %v80 = vld [vmem:[#allocation4] sm:$0xff]
      %81 = vadd.xlane.f32.xlu0 %v80
      %v82 = vpop.xlane.xlu0 %81
      %v83 = vmul.f32 %v76, %v79
      %v84 = vrsqrt.pop %v83
      %v85 = vmul.f32 %v82, %v84
      %v86 = vmul.f32 %v85, %v85
      %v87 = vsub.f32 1.0, %v86
      %v88 = vmax.f32 %v87, 0.0
      %v89 = vmul.f32 %v88, 2.0
      %v90 = vrsqrt.pop %v89
      %v91 = vmul.f32 %v89, %v90
      %vm92 = vcmp.eq.f32.partialorder %v89, inf
      %v93 = vsel %vm92, %v89, %v91
      %vm94 = vcmp.eq.f32.partialorder %v89, 0.0
      %v95 = vand.u32 %v89, 2147483648
      %v96 = vsel %vm94, %v95, %v93
      %v97 = vmul.f32 %v96, 0.00390625
      %s98 = smul.u32 0, 8
      %v99 = vlaneseq
      %v100 = vshrl.u32 %v99, 7
      %v101 = vstv %s98
      %v102 = vadd.s32 %v101, %v100
      %vm103 = vcmp.lt.s32.totalorder %v102, 8
      %v104 = vsel %vm103, %v97, 0.0
      %vm105 = vcmask 7168
      %v106 = vsel %vm105, %v104, 0.0
      %107 = vadd.xlane.f32.xlu0 %v106
      %v108 = vpop.xlane.xlu0 %107
      %v109 = vrot.slane %v108, 4
      %v110 = vadd.f32 %v108, %v109
      %v111 = vrot.slane %v110, 2
      %v112 = vadd.f32 %v110, %v111
      %v113 = vrot.slane %v112, 1
      %v114 = vadd.f32 %v112, %v113
      %s115 = vtos %v114
      %v116 = vstv %s115
      %117 = vst [vmem:[#allocation10] sm:$0xff] %v116
    $region25: #{tpu_custom_call.1} parent=1 // pred_fallthru
      _
    // Predicated region
    $region26: #{tpu_custom_call.1} parent=1 // pred_check
      _
    $region27: #{tpu_custom_call.1} parent=1 // pred_check_branch
      %119 = sbr.rel (0) target = $region29
    $region28: #{tpu_custom_call.1} parent=1 // pred_region
      %s121 = ssub.s32 128, 128
      %122 = vsyncadd [#allocation7], %s121
      %s124 = sshll.u32 [#allocation10], 4
      %s125 = int_to_ptr.vmem [resolvable:$true] %s124
      %127 = dma.vmem_to_hbm [thread:$0]  %s125, 128, %s2, [#allocation7]
    $region29: #{tpu_custom_call.1} parent=1 // pred_fallthru
      _
    // Predicated region
    $region30: #{tpu_custom_call.1} parent=1 // pred_check
      _
    $region31: #{tpu_custom_call.1} parent=1 // pred_check_branch
      %129 = sbr.rel (0) target = $region33
    $region32: #{tpu_custom_call.1} parent=1 // pred_region
      %130 = dma.done [#allocation7], 128
    $region33: #{tpu_custom_call.1} parent=1 // pred_fallthru
      _
    %131 = vsyncpa [#allocation6], 1
    %132 = vsyncpa [#allocation9], 1
    %133 = vsyncpa [#allocation7], 1

</llo_original>
